<compile_context>
chip_gen: v7x
topology: tpu7x:2x2x1
jax: 0.10.0
libtpu: 0.0.40
codegen_flags: <defaults>
</compile_context>

<pallas_src>
import functools

import jax
import jax.numpy as jnp
from jax.experimental import pallas as pl
from jax.experimental.pallas import tpu as pltpu


def _token_split_kernel(fac_ref, x_ref, w_ref, skip_ref, o_ref, *, fused):
    # fac_ref : (1,)                       SMEM scalar prefetch
    # x_ref   : (th*W, Cin)                VMEM
    # w_ref   : (Cin, nh*nwC) fused  OR  (nh, Cin, nwC) per-ih   (resident)
    # skip_ref: (th, nh, W, nwC)           VMEM (free 5-D view of skip)
    # o_ref   : (th, nh, W, nwC)           VMEM (free 5-D view of out)
    th, nh, W, nwC = skip_ref.shape

    fac = fac_ref[0].astype(jnp.float32)        # read once per grid step
    x2d = x_ref[...]                            # (th*W, Cin)

    if fused:
        # One MXU weight push / one FIFO drain for all nh sub-rows.
        proj_all = jnp.dot(x2d, w_ref[...], preferred_element_type=jnp.float32)

    for ih in range(nh):                        # static, tiny (patch height)
        if fused:
            proj = proj_all[:, ih * nwC:(ih + 1) * nwC]     # vreg-aligned slice
        else:
            proj = jnp.dot(x2d, w_ref[ih], preferred_element_type=jnp.float32)
        # Split the sublane dim only (cheap, minor dim untouched).
        proj = proj.reshape(th, W, nwC)
        sf = skip_ref[:, ih, :, :].astype(jnp.float32)
        # torch.lerp(skip, proj, fac) in one expression (no extra temps).
        o_ref[:, ih, :, :] = (sf + fac * (proj - sf)).astype(o_ref.dtype)


def _vmem_capacity_bytes():
    """Physical VMEM of the local chip; conservative (v7x-sized) fallback."""
    try:
        return int(pltpu.get_tpu_info().vmem_capacity_bytes)
    except Exception:
        pass
    try:
        kind = jax.devices()[0].device_kind.lower()
        if "v5 lite" in kind or "v5e" in kind or "v6" in kind:
            return 128 * 1024 * 1024
    except Exception:
        pass
    return 64 * 1024 * 1024


def _pick_row_tile(B, H, W, Cin, nh, nwC, itemsize, fused,
                   target_rows, block_budget, min_steps):
    """Largest sublane-aligned divisor of H whose padded, double-buffered
    blocks *plus in-kernel f32 intermediates* fit the block budget."""
    sub = max(8, 32 // itemsize)          # dtype-aware sublane padding

    def pad(v, m):
        return -(-v // m) * m

    def block_bytes(t):
        rows = t * W
        x_b = pad(rows, sub) * pad(Cin, 128) * itemsize
        so_b = t * nh * pad(W, sub) * pad(nwC, 128) * itemsize
        if fused:
            w_b = pad(Cin, sub) * pad(nh * nwC, 128) * itemsize
            proj_f32 = pad(rows, 8) * pad(nh * nwC, 128) * 4
        else:
            w_b = nh * pad(Cin, sub) * pad(nwC, 128) * itemsize
            proj_f32 = pad(rows, 8) * pad(nwC, 128) * 4
        slab_f32 = t * pad(W, 8) * pad(nwC, 128) * 4
        # 2x x (double-buffer) + 2x skip + 2x out + weight (headroom)
        # + f32 intermediates (proj, skip slab, lerp temp).
        return 2 * x_b + 2 * 2 * so_b + 2 * w_b + proj_f32 + 2 * slab_f32

    divs = [d for d in range(1, H + 1) if H % d == 0]
    # Sublane alignment: (th*W) % 8 == 0, or full-height blocks (= full dims).
    aligned = [d for d in divs if (d * W) % 8 == 0 or d == H]

    cands = [d for d in aligned
             if d * W <= max(target_rows, min(aligned) * W)
             and block_bytes(d) <= block_budget]
    if cands:
        th = max(cands)
    else:
        fit = [d for d in aligned if block_bytes(d) <= block_budget]
        th = max(fit) if fit else min(aligned)

    # Keep >= min_steps grid steps (only >1 on dual-TensorCore parts).
    while B * (H // th) < min_steps:
        smaller = [d for d in aligned if d < th and block_bytes(d) <= block_budget]
        if not smaller:
            break
        th = max(smaller)
    return th


def token_split(x, skip, weight, fac, patch_size=(2, 2), row_tile=None):
    """TokenSplit forward.

    x      : (B, H, W, Cin)
    skip   : (B, H*nh, W*nw, Cout)
    weight : (Cout*nh*nw, Cin)   -- nn.Linear weight (bias-free)
    fac    : (1,)                -- lerp factor parameter
    """
    nh, nw = patch_size
    B, H, W, Cin = x.shape
    N, Cin_w = weight.shape
    assert Cin_w == Cin
    Cout = N // (nh * nw)
    assert Cout * nh * nw == N
    assert skip.shape == (B, H * nh, W * nw, Cout)
    nwC = nw * Cout

    # Fused single-matmul path only when the per-ih lane slice is vreg-aligned.
    fused = (nwC % 128 == 0)
    # TODO(synk): for nwC < 128 the output block's lane dim is < 128 (masked
    # vst.msk stores); a lane-dense repack would need an in-kernel relayout
    # reshape, which we avoid for robustness.

    itemsize = jnp.dtype(x.dtype).itemsize

    vmem_cap = _vmem_capacity_bytes()
    if vmem_cap <= 64 * 1024 * 1024:
        # v7x-class: 64 MiB physical VMEM, 2 TensorCores.
        block_budget = 18 * 1024 * 1024
        vmem_limit = 44 * 1024 * 1024
        target_rows = 512
        min_steps = 2
    else:
        # v5e / v6e-class: 128 MiB VMEM, single TensorCore (grid = serial loop).
        block_budget = 64 * 1024 * 1024
        vmem_limit = 96 * 1024 * 1024
        target_rows = 1024
        min_steps = 1

    if row_tile is None:
        row_tile = _pick_row_tile(B, H, W, Cin, nh, nwC, itemsize, fused,
                                  target_rows, block_budget, min_steps)
    th = row_tile
    assert H % th == 0
    assert (th * W) % 8 == 0 or th == H, "row tile must be sublane-aligned"

    # Free (metadata-only) views -- no host-side transposes of the big tensors.
    x_v = x.reshape(B, H * W, Cin)
    skip_v = skip.reshape(B, H, nh, W, nwC)

    # Weight is tiny: reorder once on the host and pin to the activation dtype
    # so bf16 activations stay on the fast bf16xbf16 MXU path.
    if fused:
        w_k = jnp.transpose(weight).astype(x.dtype)                       # (Cin, nh*nwC)
        w_spec = pl.BlockSpec((Cin, nh * nwC), lambda b, i, fac_ref: (0, 0))
    else:
        w_k = jnp.swapaxes(weight.reshape(nh, nwC, Cin), 1, 2).astype(x.dtype)  # (nh, Cin, nwC)
        w_spec = pl.BlockSpec((nh, Cin, nwC), lambda b, i, fac_ref: (0, 0, 0))

    grid = (B, H // th)

    flops = 2 * B * H * W * Cin * N
    bytes_accessed = int((x.size + 2 * skip.size + w_k.size) * itemsize)

    kernel = functools.partial(_token_split_kernel, fused=fused)

    out_v = pl.pallas_call(
        kernel,
        out_shape=jax.ShapeDtypeStruct((B, H, nh, W, nwC), x.dtype),
        grid_spec=pltpu.PrefetchScalarGridSpec(
            num_scalar_prefetch=1,            # fac -> SMEM
            grid=grid,
            in_specs=[
                pl.BlockSpec((pl.Squeezed(), th * W, Cin),
                             lambda b, i, fac_ref: (b, i, 0)),
                w_spec,
                pl.BlockSpec((pl.Squeezed(), th, nh, W, nwC),
                             lambda b, i, fac_ref: (b, i, 0, 0, 0)),
            ],
            out_specs=pl.BlockSpec((pl.Squeezed(), th, nh, W, nwC),
                                   lambda b, i, fac_ref: (b, i, 0, 0, 0)),
        ),
        compiler_params=pltpu.CompilerParams(
            dimension_semantics=("parallel", "parallel"),
            vmem_limit_bytes=vmem_limit,
        ),
        cost_estimate=pl.CostEstimate(
            flops=flops, transcendentals=0, bytes_accessed=bytes_accessed),
    )(fac, x_v, w_k, skip_v)

    # Free merge back to the public (B, H*nh, W*nw, Cout) layout.
    return out_v.reshape(B, H * nh, W * nw, Cout)


def token_split_ref(x, skip, weight, fac, patch_size=(2, 2)):
    nh, nw = patch_size
    B, H, W, Cin = x.shape
    N = weight.shape[0]
    Cout = N // (nh * nw)
    proj = jnp.einsum("bhwc,nc->bhwn", x, weight)
    proj = (proj.reshape(B, H, W, nh, nw, Cout)
                .transpose(0, 1, 3, 2, 4, 5)
                .reshape(B, H * nh, W * nw, Cout))
    f = fac[0].astype(x.dtype)
    return skip + f * (proj - skip)


if __name__ == "__main__":
    key = jax.random.PRNGKey(0)
    k1, k2, k3 = jax.random.split(key, 3)

    B, H, W = 2, 8, 16
    Cin, Cout = 32, 16
    nh, nw = 2, 2

    x = jax.random.normal(k1, (B, H, W, Cin), dtype=jnp.float32)
    skip = jax.random.normal(k2, (B, H * nh, W * nw, Cout), dtype=jnp.float32)
    # nn.Linear weight (out_features = Cout*nh*nw, in_features = Cin), no bias.
    weight = jax.random.normal(k3, (Cout * nh * nw, Cin), dtype=jnp.float32) * 0.05
    fac = jnp.ones((1,), dtype=jnp.float32) * 0.5   # nn.Parameter(torch.ones(1)*0.5)

    out = token_split(x, skip, weight, fac, patch_size=(nh, nw))
    out = jax.block_until_ready(out)

    ref = token_split_ref(x, skip, weight, fac, patch_size=(nh, nw))
    assert out.shape == ref.shape
    assert jnp.allclose(out, ref, atol=1e-4, rtol=1e-4), \
        float(jnp.max(jnp.abs(out - ref)))

    print("KERNEL_OK")
</pallas_src>

<mosaic_0001>
module attributes {stable_mosaic.version = 11 : i64} {
  func.func @_token_split_kernel(%arg0: i32, %arg1: i32, %arg2: memref<1xf32, #tpu.memory_space<smem>>, %arg3: memref<1x128x32xf32, #tpu.memory_space<vmem>>, %arg4: memref<2x32x32xf32, #tpu.memory_space<vmem>>, %arg5: memref<1x8x2x16x32xf32, #tpu.memory_space<vmem>>, %arg6: memref<1x8x2x16x32xf32, #tpu.memory_space<vmem>>) attributes {dimension_semantics = [#tpu.dimension_semantics<parallel>, #tpu.dimension_semantics<parallel>], iteration_bounds = array<i64: 2, 1>, scalar_prefetch = 1 : i64, scratch_operands = 0 : i64, tpu.core_type = #tpu.core_type<tc>, window_params = [{transform_indices = @transform_0, window_bounds = array<i64: 1, 128, 32>}, {pipeline_mode = #tpu.pipeline_mode<synchronous>, transform_indices = @transform_1, window_bounds = array<i64: 2, 32, 32>}, {transform_indices = @transform_2, window_bounds = array<i64: 1, 8, 2, 16, 32>}, {transform_indices = @transform_3, window_bounds = array<i64: 1, 8, 2, 16, 32>}]} {
    %c0 = arith.constant 0 : index
    %0 = memref.load %arg2[%c0] : memref<1xf32, #tpu.memory_space<smem>>
    %c0_0 = arith.constant 0 : index
    %c0_1 = arith.constant 0 : index
    %c0_2 = arith.constant 0 : index
    %1 = vector.load %arg3[%c0_0, %c0_1, %c0_2] : memref<1x128x32xf32, #tpu.memory_space<vmem>>, vector<1x128x32xf32>
    %2 = vector.shape_cast %1 : vector<1x128x32xf32> to vector<128x32xf32>
    %c0_3 = arith.constant 0 : index
    %c0_4 = arith.constant 0 : index
    %c0_5 = arith.constant 0 : index
    %3 = vector.load %arg4[%c0_3, %c0_4, %c0_5] : memref<2x32x32xf32, #tpu.memory_space<vmem>>, vector<1x32x32xf32>
    %4 = vector.shape_cast %3 : vector<1x32x32xf32> to vector<32x32xf32>
    %cst = arith.constant dense<0.000000e+00> : vector<128x32xf32>
    %5 = tpu.matmul %2, %4, %cst {dimension_numbers = #tpu.dot_dimension_numbers<[1], [0], [0], [1], [0, 0, 1, 1], [], []>} : vector<128x32xf32>, vector<32x32xf32>, vector<128x32xf32> -> vector<128x32xf32>
    %6 = vector.shape_cast %5 : vector<128x32xf32> to vector<8x16x32xf32>
    %c0_6 = arith.constant 0 : index
    %c0_7 = arith.constant 0 : index
    %c0_8 = arith.constant 0 : index
    %c0_9 = arith.constant 0 : index
    %c0_10 = arith.constant 0 : index
    %7 = vector.load %arg5[%c0_6, %c0_7, %c0_8, %c0_9, %c0_10] : memref<1x8x2x16x32xf32, #tpu.memory_space<vmem>>, vector<1x8x1x16x32xf32>
    %8 = vector.shape_cast %7 : vector<1x8x1x16x32xf32> to vector<8x16x32xf32>
    %9 = arith.subf %6, %8 : vector<8x16x32xf32>
    %10 = vector.broadcast %0 : f32 to vector<8x16x32xf32>
    %11 = arith.mulf %10, %9 : vector<8x16x32xf32>
    %12 = arith.addf %8, %11 : vector<8x16x32xf32>
    %c0_11 = arith.constant 0 : index
    %c0_12 = arith.constant 0 : index
    %c0_13 = arith.constant 0 : index
    %c0_14 = arith.constant 0 : index
    %c0_15 = arith.constant 0 : index
    %13 = vector.load %arg6[%c0_11, %c0_12, %c0_13, %c0_14, %c0_15] : memref<1x8x2x16x32xf32, #tpu.memory_space<vmem>>, vector<1x8x1x16x32xf32>
    %14 = vector.shape_cast %13 : vector<1x8x1x16x32xf32> to vector<8x16x32xf32>
    %15 = vector.shape_cast %12 : vector<8x16x32xf32> to vector<1x8x1x16x32xf32>
    tpu.vector_store %arg6[%c0_11, %c0_12, %c0_13, %c0_14, %c0_15], %15 {strides = array<i32>} : memref<1x8x2x16x32xf32, #tpu.memory_space<vmem>>, vector<1x8x1x16x32xf32>,
    %c1 = arith.constant 1 : index
    %c0_16 = arith.constant 0 : index
    %c0_17 = arith.constant 0 : index
    %16 = vector.load %arg4[%c1, %c0_16, %c0_17] : memref<2x32x32xf32, #tpu.memory_space<vmem>>, vector<1x32x32xf32>
    %17 = vector.shape_cast %16 : vector<1x32x32xf32> to vector<32x32xf32>
    %cst_18 = arith.constant dense<0.000000e+00> : vector<128x32xf32>
    %18 = tpu.matmul %2, %17, %cst_18 {dimension_numbers = #tpu.dot_dimension_numbers<[1], [0], [0], [1], [0, 0, 1, 1], [], []>} : vector<128x32xf32>, vector<32x32xf32>, vector<128x32xf32> -> vector<128x32xf32>
    %19 = vector.shape_cast %18 : vector<128x32xf32> to vector<8x16x32xf32>
    %c0_19 = arith.constant 0 : index
    %c0_20 = arith.constant 0 : index
    %c1_21 = arith.constant 1 : index
    %c0_22 = arith.constant 0 : index
    %c0_23 = arith.constant 0 : index
    %20 = vector.load %arg5[%c0_19, %c0_20, %c1_21, %c0_22, %c0_23] : memref<1x8x2x16x32xf32, #tpu.memory_space<vmem>>, vector<1x8x1x16x32xf32>
    %21 = vector.shape_cast %20 : vector<1x8x1x16x32xf32> to vector<8x16x32xf32>
    %22 = arith.subf %19, %21 : vector<8x16x32xf32>
    %23 = vector.broadcast %0 : f32 to vector<8x16x32xf32>
    %24 = arith.mulf %23, %22 : vector<8x16x32xf32>
    %25 = arith.addf %21, %24 : vector<8x16x32xf32>
    %c0_24 = arith.constant 0 : index
    %c0_25 = arith.constant 0 : index
    %c1_26 = arith.constant 1 : index
    %c0_27 = arith.constant 0 : index
    %c0_28 = arith.constant 0 : index
    %26 = vector.load %arg6[%c0_24, %c0_25, %c1_26, %c0_27, %c0_28] : memref<1x8x2x16x32xf32, #tpu.memory_space<vmem>>, vector<1x8x1x16x32xf32>
    %27 = vector.shape_cast %26 : vector<1x8x1x16x32xf32> to vector<8x16x32xf32>
    %28 = vector.shape_cast %25 : vector<8x16x32xf32> to vector<1x8x1x16x32xf32>
    tpu.vector_store %arg6[%c0_24, %c0_25, %c1_26, %c0_27, %c0_28], %28 {strides = array<i32>} : memref<1x8x2x16x32xf32, #tpu.memory_space<vmem>>, vector<1x8x1x16x32xf32>,
    return
  }
  func.func @transform_0(%arg0: i32, %arg1: i32, %arg2: memref<1xf32, #tpu.memory_space<smem>>) -> (i32, i32, i32) {
    %c0_i32 = arith.constant 0 : i32
    %c0_i32_0 = arith.constant 0 : i32
    return %arg0, %arg1, %c0_i32 : i32, i32, i32
  }
  func.func @transform_1(%arg0: i32, %arg1: i32, %arg2: memref<1xf32, #tpu.memory_space<smem>>) -> (i32, i32, i32) {
    %c0_i32 = arith.constant 0 : i32
    %c0_i32_0 = arith.constant 0 : i32
    %c0_i32_1 = arith.constant 0 : i32
    %c0_i32_2 = arith.constant 0 : i32
    return %c0_i32, %c0_i32_0, %c0_i32_1 : i32, i32, i32
  }
  func.func @transform_2(%arg0: i32, %arg1: i32, %arg2: memref<1xf32, #tpu.memory_space<smem>>) -> (i32, i32, i32, i32, i32) {
    %c0_i32 = arith.constant 0 : i32
    %c0_i32_0 = arith.constant 0 : i32
    %c0_i32_1 = arith.constant 0 : i32
    %c0_i32_2 = arith.constant 0 : i32
    return %arg0, %arg1, %c0_i32, %c0_i32_0, %c0_i32_1 : i32, i32, i32, i32, i32
  }
  func.func @transform_3(%arg0: i32, %arg1: i32, %arg2: memref<1xf32, #tpu.memory_space<smem>>) -> (i32, i32, i32, i32, i32) {
    %c0_i32 = arith.constant 0 : i32
    %c0_i32_0 = arith.constant 0 : i32
    %c0_i32_1 = arith.constant 0 : i32
    %c0_i32_2 = arith.constant 0 : i32
    return %arg0, %arg1, %c0_i32, %c0_i32_0, %c0_i32_1 : i32, i32, i32, i32, i32
  }
}

</mosaic_0001>

<llo_original>
// kernel: tpu_custom_call.1
$region0: #{tpu_custom_call.1}
  #allocation0 [shape = 'u32[]', space=smem, size = 0x4, offset = 0x4, fixed_abs, tag = 'smem constant byte address 0x4 - core index']
  #allocation1 [shape = 'u32[144,128]{1,0:T(1,128)}', space=vmem, size = 0x12000, scoped, tag = 'internal scratch']
  #allocation2 [shape = 's32[1]{0}', space=sflag, size = 0x4, scoped, tag = 'scoped memory for tpu_custom_call.1']
  #allocation3 [shape = 'f32[1]{0:T(128)S(6)}', space=smem, size = 0x200, scoped, tag = 'prefetched SMEM operand 0']
  %s0 = inlined_call_operand.<no memory space> [shape: f32[1], index: 0, kind: input, shape index: {}]
  %s1 = inlined_call_operand.vmem [shape: f32[2,128,32], index: 1, kind: input, shape index: {}]
  %s2 = inlined_call_operand.vmem [shape: f32[2,32,32], index: 2, kind: input, shape index: {}]
  %s3 = inlined_call_operand.hbm [shape: f32[2,8,2,16,32], index: 3, kind: input, shape index: {}]
  %s4 = inlined_call_operand.hbm [shape: f32[2,8,2,16,32], index: 4, kind: output, shape index: {}]
  %s5 = sld [smem:[#allocation0]]
  $region49: #{tpu_custom_call.1} parent=0
    _
  %s7 = ssub.s32 1, %s5
  %s8 = scalar_select 0, %s7, %s5
  %9 = sst [smem:[#allocation3]] %s0
  $region1: #{tpu_custom_call.1} parent=0
    #allocation4 [shape = 'u8[262144]{0}', space=vmem, size = 0x40000, scoped, tag = 'input window, operand 3']
    #allocation5 [shape = 's32[2]{0}', space=sflag, size = 0x8, scoped, tag = 'scoped memory for tpu_custom_call.1']
    #allocation6 [shape = 's32[2]{0}', space=sflag, size = 0x8, scoped, tag = 'scoped memory for tpu_custom_call.1']
    #allocation7 [shape = 'u8[262144]{0}', space=vmem, size = 0x40000, scoped, tag = 'output window, operand 0']
    %10 = vsyncpa [#allocation5], 0
    %s11 = scalar_lea.sflag [#allocation5], 1
    %12 = vsyncpa %s11, 0
    %13 = vsyncpa [#allocation6], 0
    %s14 = scalar_lea.sflag [#allocation6], 1
    %15 = vsyncpa %s14, 0
    loop: start=0, step=1, limit=4
    $region2: #{tpu_custom_call.1} parent=1 // loop_pre_header
      _
    $region3: #{tpu_custom_call.1} parent=1 // loop_header
      %s17 = sphi 0, %s21
      %p18 = scmp.ge.s32.totalorder %s17, 4
      %s24 = sphi 0, %s36
      %s25 = sphi 0, %s32
      %s26 = sphi 0, %s24
      %s27 = sphi 0, %s25
      %s28 = sphi 0, %s26
      %s29 = sphi 0, %s27
      %s41 = sphi 0, %s43
      %s44 = sphi 0, %s41
      %s45 = sphi 0, %s44
      %s61 = sphi 0, %s45
      %s65 = sphi 0, %s65
      %s67 = sphi 0, %s65
      %s68 = sphi 0, %s67
      %s82 = sphi 0, %s68
      %s90 = sphi 0, %s92
      %s93 = sphi 0, %s90
      %s94 = sphi 0, %s93
      %s110 = sphi 0, %s94
      %s118 = sphi 0, %s120
      %s121 = sphi 0, %s118
      %s122 = sphi 0, %s121
      %s138 = sphi 0, %s122
    $region4: #{tpu_custom_call.1} parent=1 // loop_header_branch
      %20 = sbr.rel (%p18) target = $region8
    $region5: #{tpu_custom_call.1} parent=1 // loop_body
      %s22 = ssub.s32 %s17, 1
      %s23 = ssub.s32 %s17, 2
      %s30 = sadd.s32 1, %s25
      %p31 = scmp.ge.s32.totalorder %s30, 1
      %s32 = scalar_select %p31, 0, %s30
      %s33 = sadd.s32 1, %s24
      %s34 = scalar_select %p31, %s33, %s24
      %p35 = scmp.ge.s32.totalorder %s34, 2
      %s36 = scalar_select %p35, 0, %s34
      %s37 = ssub.s32 %s24, %s36
      %s38 = ssub.s32 %s25, %s32
      %s39 = sor.u32 %s37, %s38
      %p40 = scmp.eq.s32.totalorder %s39, 0
      %s42 = sadd.s32 %s41, 1
      %s43 = scalar_select %p40, %s41, %s42
      %p46 = pneg %p40
      %p47 = scmp.eq.s32.totalorder %s17, 1
      %p48 = por %p46, %p47
      %p49 = scmp.ne.s32.totalorder %s41, %s44
      %p50 = scmp.eq.s32.totalorder %s17, 0
      %p51 = por %p49, %p50
      %p52 = scmp.ne.s32.totalorder %s41, %s44
      %p53 = scmp.eq.s32.totalorder %s22, 1
      %p54 = por %p52, %p53
      %p55 = scmp.ne.s32.totalorder %s44, %s45
      %p56 = scmp.eq.s32.totalorder %s22, 0
      %p57 = por %p55, %p56
      %p58 = scmp.ne.s32.totalorder %s44, %s45
      %p59 = scmp.eq.s32.totalorder %s23, 1
      %p60 = por %p58, %p59
      %p62 = scmp.ne.s32.totalorder %s45, %s61
      %p63 = scmp.eq.s32.totalorder %s23, 0
      %p64 = por %p62, %p63
      %s66 = sadd.s32 %s65, 1
      %p69 = scmp.eq.s32.totalorder %s17, 1
      %p70 = scmp.ne.s32.totalorder %s65, %s67
      %p71 = scmp.eq.s32.totalorder %s17, 0
      %p72 = por %p70, %p71
      %p73 = scmp.ne.s32.totalorder %s65, %s67
      %p74 = scmp.eq.s32.totalorder %s22, 1
      %p75 = por %p73, %p74
      %p76 = scmp.ne.s32.totalorder %s67, %s68
      %p77 = scmp.eq.s32.totalorder %s22, 0
      %p78 = por %p76, %p77
      %p79 = scmp.ne.s32.totalorder %s67, %s68
      %p80 = scmp.eq.s32.totalorder %s23, 1
      %p81 = por %p79, %p80
      %p83 = scmp.ne.s32.totalorder %s68, %s82
      %p84 = scmp.eq.s32.totalorder %s23, 0
      %p85 = por %p83, %p84
      %s86 = ssub.s32 %s24, %s36
      %s87 = ssub.s32 %s25, %s32
      %s88 = sor.u32 %s86, %s87
      %p89 = scmp.eq.s32.totalorder %s88, 0
      %s91 = sadd.s32 %s90, 1
      %s92 = scalar_select %p89, %s90, %s91
      %p95 = pneg %p89
      %p96 = scmp.eq.s32.totalorder %s17, 1
      %p97 = por %p95, %p96
      %p98 = scmp.ne.s32.totalorder %s90, %s93
      %p99 = scmp.eq.s32.totalorder %s17, 0
      %p100 = por %p98, %p99
      %p101 = scmp.ne.s32.totalorder %s90, %s93
      %p102 = scmp.eq.s32.totalorder %s22, 1
      %p103 = por %p101, %p102
      %p104 = scmp.ne.s32.totalorder %s93, %s94
      %p105 = scmp.eq.s32.totalorder %s22, 0
      %p106 = por %p104, %p105
      %p107 = scmp.ne.s32.totalorder %s93, %s94
      %p108 = scmp.eq.s32.totalorder %s23, 1
      %p109 = por %p107, %p108
      %p111 = scmp.ne.s32.totalorder %s94, %s110
      %p112 = scmp.eq.s32.totalorder %s23, 0
      %p113 = por %p111, %p112
      %s114 = ssub.s32 %s24, %s36
      %s115 = ssub.s32 %s25, %s32
      %s116 = sor.u32 %s114, %s115
      %p117 = scmp.eq.s32.totalorder %s116, 0
      %s119 = sadd.s32 %s118, 1
      %s120 = scalar_select %p117, %s118, %s119
      %p123 = pneg %p117
      %p124 = scmp.eq.s32.totalorder %s17, 1
      %p125 = por %p123, %p124
      %p126 = scmp.ne.s32.totalorder %s118, %s121
      %p127 = scmp.eq.s32.totalorder %s17, 0
      %p128 = por %p126, %p127
      %p129 = scmp.ne.s32.totalorder %s118, %s121
      %p130 = scmp.eq.s32.totalorder %s22, 1
      %p131 = por %p129, %p130
      %p132 = scmp.ne.s32.totalorder %s121, %s122
      %p133 = scmp.eq.s32.totalorder %s22, 0
      %p134 = por %p132, %p133
      %p135 = scmp.ne.s32.totalorder %s121, %s122
      %p136 = scmp.eq.s32.totalorder %s23, 1
      %p137 = por %p135, %p136
      %p139 = scmp.ne.s32.totalorder %s122, %s138
      %p140 = scmp.eq.s32.totalorder %s23, 0
      %p141 = por %p139, %p140
      %p142 = scmp.le.s32.totalorder 1, %s17
      %p143 = scmp.lt.s32.totalorder %s17, 3
      %p144 = pnand %p142, %p143
      %p145 = pneg %p144
      // Predicated region
      $region9: #{tpu_custom_call.1} parent=5 // pred_check
        _
      $region10: #{tpu_custom_call.1} parent=5 // pred_check_branch
        %147 = sbr.rel (%p144) target = $region12
      $region11: #{tpu_custom_call.1} parent=5 // pred_region
        %s148 = ssub.s32 %s17, 1
        // Predicated region
        $region13: #{tpu_custom_call.1} parent=11 // pred_check
          %p149 = pneg %p78
        $region14: #{tpu_custom_call.1} parent=11 // pred_check_branch
          %151 = sbr.rel (%p149) target = $region16
        $region15: #{tpu_custom_call.1} parent=11 // pred_region
          _
        $region16: #{tpu_custom_call.1} parent=11 // pred_fallthru
          _
      $region12: #{tpu_custom_call.1} parent=5 // pred_fallthru
        _
      %p152 = scmp.lt.s32.totalorder %s17, 2
      // Predicated region
      $region17: #{tpu_custom_call.1} parent=5 // pred_check
        %p153 = pneg %p152
      $region18: #{tpu_custom_call.1} parent=5 // pred_check_branch
        %155 = sbr.rel (%p153) target = $region20
      $region19: #{tpu_custom_call.1} parent=5 // pred_region
        // Predicated region
        $region21: #{tpu_custom_call.1} parent=19 // pred_check
          %p156 = pneg %p51
        $region22: #{tpu_custom_call.1} parent=19 // pred_check_branch
          %158 = sbr.rel (%p156) target = $region24
        $region23: #{tpu_custom_call.1} parent=19 // pred_region
          %s159 = smul.u32 16, %s25
          %p160 = scmp.lt.s32.totalorder %s24, 1
          %s161 = scalar_select %p160, %s24, 1
          %p162 = scmp.lt.s32.totalorder %s159, 15
          %s163 = scalar_select %p162, %s159, 15
          %s164 = smul.addr %s161, 16
          %s165 = sadd.s32 %s163, %s164
          %s166 = smul.addr %s165, 8
          %s167 = scalar_lea.vmem %s1, %s166
          %s168 = smul.u32 16, %s25
        $region24: #{tpu_custom_call.1} parent=19 // pred_fallthru
          _
        // Predicated region
        $region25: #{tpu_custom_call.1} parent=19 // pred_check
          %p169 = pneg %p100
        $region26: #{tpu_custom_call.1} parent=19 // pred_check_branch
          %171 = sbr.rel (%p169) target = $region28
        $region27: #{tpu_custom_call.1} parent=19 // pred_region
          %s172 = sand.u32 %s90, 1
          %s173 = scalar_lea.sflag [#allocation5], %s172
          %s174 = sand.u32 %s90, 1
          %s175 = smul.addr %s174, 256
          %s176 = scalar_lea.vmem [#allocation4], %s175
          %s177 = smul.u32 8, %s25
          %s179 = ssub.s32 4096, 4096
          %180 = vsyncadd %s173, %s179
          %s181 = smul.addr %s177, 4
          %s182 = smul.addr %s24, 32
          %s183 = sadd.s32 %s181, %s182
          %s184 = smul.addr %s183, 128
          %s185 = scalar_lea.hbm %s3, %s184
          %s186 = sshll.u32 %s176, 4
          %s187 = int_to_ptr.vmem [resolvable:$true] %s186
          %192 = dma.hbm_to_vmem [thread:$0]  %s185, 4096, %s187, %s173, 128, 128, 8
        $region28: #{tpu_custom_call.1} parent=19 // pred_fallthru
          _
      $region20: #{tpu_custom_call.1} parent=5 // pred_fallthru
        _
      %p193 = scmp.le.s32.totalorder 1, %s17
      %p194 = scmp.lt.s32.totalorder %s17, 3
      %p195 = pnand %p193, %p194
      %p196 = pneg %p195
      // Predicated region
      $region29: #{tpu_custom_call.1} parent=5 // pred_check
        _
      $region30: #{tpu_custom_call.1} parent=5 // pred_check_branch
        %198 = sbr.rel (%p195) target = $region32
      $region31: #{tpu_custom_call.1} parent=5 // pred_region
        %s199 = ssub.s32 %s17, 1
        %s200 = sand.u32 %s93, 1
        %s201 = scalar_lea.sflag [#allocation5], %s200
        %s202 = sand.u32 %s93, 1
        %s203 = smul.addr %s202, 256
        %s204 = scalar_lea.vmem [#allocation4], %s203
        // Predicated region
        $region33: #{tpu_custom_call.1} parent=31 // pred_check
          %p205 = pneg %p106
        $region34: #{tpu_custom_call.1} parent=31 // pred_check_branch
          %207 = sbr.rel (%p205) target = $region36
        $region35: #{tpu_custom_call.1} parent=31 // pred_region
          %208 = dma.done %s201, 4096
        $region36: #{tpu_custom_call.1} parent=31 // pred_fallthru
          _
        %s209 = smul.u32 16, %s27
        %p210 = scmp.lt.s32.totalorder %s26, 1
        %s211 = scalar_select %p210, %s26, 1
        %p212 = scmp.lt.s32.totalorder %s209, 15
        %s213 = scalar_select %p212, %s209, 15
        %s214 = smul.addr %s211, 16
        %s215 = sadd.s32 %s213, %s214
        %s216 = smul.addr %s215, 8
        %s217 = scalar_lea.vmem %s1, %s216
        %p218 = pneg %p57
        %p219 = pneg %p54
        %p220 = pneg %p78
        %p221 = pneg %p75
        %s222 = sand.u32 %s93, 1
        %s223 = scalar_lea.sflag [#allocation5], %s222
        %s224 = sand.u32 %s93, 1
        %s225 = smul.addr %s224, 256
        %s226 = scalar_lea.vmem [#allocation4], %s225
        %p227 = pneg %p106
        %p228 = pneg %p103
        %p229 = pneg %p134
        %p230 = pneg %p131
        %s231 = sand.u32 %s121, 1
        %s232 = scalar_lea.sflag [#allocation6], %s231
        %s233 = sand.u32 %s121, 1
        %s234 = smul.addr %s233, 256
        %s235 = scalar_lea.vmem [#allocation7], %s234
        %s236 = smul.u32 16, %s27
        %p237 = scmp.lt.s32.totalorder %s26, 1
        %s238 = scalar_select %p237, %s26, 1
        %p239 = scmp.lt.s32.totalorder %s236, 15
        %s240 = scalar_select %p239, %s236, 15
        %s241 = smul.addr %s238, 16
        %s242 = sadd.s32 %s240, %s241
        %s243 = smul.addr %s242, 8
        %s244 = scalar_lea.vmem %s1, %s243
        %s245 = smul.u32 16, %s27
        %s246 = smul.u32 8, %s27
        %s247 = smul.u32 8, %s27
        %s248 = sld [smem:[#allocation3]]
        %v249 = vld [vmem:[%s244] sm:$0xff]
        %v250 = vld [vmem:[%s244 + $0x8] sm:$0xff]
        %v251 = vld [vmem:[%s244 + $0x10] sm:$0xff]
        %v252 = vld [vmem:[%s244 + $0x18] sm:$0xff]
        %v253 = vld [vmem:[%s244 + $0x20] sm:$0xff]
        %v254 = vld [vmem:[%s244 + $0x28] sm:$0xff]
        %v255 = vld [vmem:[%s244 + $0x30] sm:$0xff]
        %v256 = vld [vmem:[%s244 + $0x38] sm:$0xff]
        %v257 = vld [vmem:[%s244 + $0x40] sm:$0xff]
        %v258 = vld [vmem:[%s244 + $0x48] sm:$0xff]
        %v259 = vld [vmem:[%s244 + $0x50] sm:$0xff]
        %v260 = vld [vmem:[%s244 + $0x58] sm:$0xff]
        %v261 = vld [vmem:[%s244 + $0x60] sm:$0xff]
        %v262 = vld [vmem:[%s244 + $0x68] sm:$0xff]
        %v263 = vld [vmem:[%s244 + $0x70] sm:$0xff]
        %v264 = vld [vmem:[%s244 + $0x78] sm:$0xff]
        %v265 = vld [vmem:[%s2] sm:$0xff]
        %v266 = vld [vmem:[%s2 + $0x8] sm:$0xff]
        %v267 = vld [vmem:[%s2 + $0x10] sm:$0xff]
        %v268 = vld [vmem:[%s2 + $0x18] sm:$0xff]
        %vm269 = vcmask 261120
        %v271 = vsel %vm269, %v249, 0
        %v274 = vsel %vm269, %v250, 0
        %v277 = vsel %vm269, %v251, 0
        %v280 = vsel %vm269, %v252, 0
        %v283 = vsel %vm269, %v253, 0
        %v286 = vsel %vm269, %v254, 0
        %v289 = vsel %vm269, %v255, 0
        %v292 = vsel %vm269, %v256, 0
        %v295 = vsel %vm269, %v257, 0
        %v298 = vsel %vm269, %v258, 0
        %v301 = vsel %vm269, %v259, 0
        %v304 = vsel %vm269, %v260, 0
        %v307 = vsel %vm269, %v261, 0
        %v310 = vsel %vm269, %v262, 0
        %v313 = vsel %vm269, %v263, 0
        %v316 = vsel %vm269, %v264, 0
        %318 = vmatprep.subr.mxu0 0.0
        %319 = vmatpush1.msra.mxu0 %v265
        %320 = vmatprep.subr.mxu0 0.0
        %321 = vmatpush1.msra.mxu0 %v266
        %322 = vmatprep.subr.mxu0 0.0
        %323 = vmatpush1.msra.mxu0 %v267
        %324 = vmatprep.subr.mxu0 0.0
        %325 = vmatpush1.msra.mxu0 %v268
        %326 = vmatprep.subr.mxu0 0.0
        %327 = vmatpush1.msra.mxu0 0.0
        %328 = vmatprep.subr.mxu0 0.0
        %329 = vmatpush1.msra.mxu0 0.0
        %330 = vmatprep.subr.mxu0 0.0
        %331 = vmatpush1.msra.mxu0 0.0
        %332 = vmatprep.subr.mxu0 0.0
        %333 = vmatpush1.msra.mxu0 0.0
        %334 = vmatprep.subr.mxu0 0.0
        %335 = vmatpush1.msra.mxu0 0.0
        %336 = vmatprep.subr.mxu0 0.0
        %337 = vmatpush1.msra.mxu0 0.0
        %338 = vmatprep.subr.mxu0 0.0
        %339 = vmatpush1.msra.mxu0 0.0
        %340 = vmatprep.subr.mxu0 0.0
        %341 = vmatpush1.msra.mxu0 0.0
        %342 = vmatprep.subr.mxu0 0.0
        %343 = vmatpush1.msra.mxu0 0.0
        %344 = vmatprep.subr.mxu0 0.0
        %345 = vmatpush1.msra.mxu0 0.0
        %346 = vmatprep.subr.mxu0 0.0
        %347 = vmatpush1.msra.mxu0 0.0
        %348 = vmatprep.subr.mxu0 0.0
        %349 = vmatpush1.msra.mxu0 0.0
        %350 = vmatprep.subr.mxu0 0.0
        %351 = vmatpush1.msra.mxu0 0.0
        %352 = vmatprep.subr.mxu0 0.0
        %353 = vmatpush1.msra.mxu0 0.0
        %354 = vmatprep.subr.mxu0 0.0
        %355 = vmatpush1.msra.mxu0 0.0
        %356 = vmatprep.subr.mxu0 0.0
        %357 = vmatpush1.msra.mxu0 0.0
        %358 = vmatprep.subr.mxu0 0.0
        %359 = vmatpush1.msra.mxu0 0.0
        %360 = vmatprep.subr.mxu0 0.0
        %361 = vmatpush1.msra.mxu0 0.0
        %362 = vmatprep.subr.mxu0 0.0
        %363 = vmatpush1.msra.mxu0 0.0
        %364 = vmatprep.subr.mxu0 0.0
        %365 = vmatpush1.msra.mxu0 0.0
        %366 = vmatprep.subr.mxu0 0.0
        %367 = vmatpush1.msra.mxu0 0.0
        %368 = vmatprep.subr.mxu0 0.0
        %369 = vmatpush1.msra.mxu0 0.0
        %370 = vmatprep.subr.mxu0 0.0
        %371 = vmatpush1.msra.mxu0 0.0
        %372 = vmatprep.subr.mxu0 0.0
        %373 = vmatpush1.msra.mxu0 0.0
        %374 = vmatprep.subr.mxu0 0.0
        %375 = vmatpush1.msra.mxu0 0.0
        %376 = vmatprep.subr.mxu0 0.0
        %377 = vmatpush1.msra.mxu0 0.0
        %378 = vmatprep.subr.mxu0 0.0
        %379 = vmatpush1.msra.mxu0 0.0
        %380 = vmatprep.subr.mxu0 0.0
        %381 = vmatpush1.msra.mxu0 0.0
        %382 = vmatprep.mubr.f32.mxu0 0.0
        %383 = vmatmul.mubr.f32.gmra.mrb[0].mxu0 %v271
        %v384 = vpop.f32.mrb[0].mxu0
        %v385 = vadd.f32 0.0, %v384
        %v386 = vpop.f32.mrb[0].mxu0
        %387 = vmatprep.mubr.f32.mxu0 0.0
        %388 = vmatmul.mubr.f32.gmra.mrb[0].mxu0 %v274
        %v389 = vpop.f32.mrb[0].mxu0
        %v390 = vadd.f32 0.0, %v389
        %v391 = vpop.f32.mrb[0].mxu0
        %392 = vmatprep.mubr.f32.mxu0 0.0
        %393 = vmatmul.mubr.f32.gmra.mrb[0].mxu0 %v277
        %v394 = vpop.f32.mrb[0].mxu0
        %v395 = vadd.f32 0.0, %v394
        %v396 = vpop.f32.mrb[0].mxu0
        %397 = vmatprep.mubr.f32.mxu0 0.0
        %398 = vmatmul.mubr.f32.gmra.mrb[0].mxu0 %v280
        %v399 = vpop.f32.mrb[0].mxu0
        %v400 = vadd.f32 0.0, %v399
        %v401 = vpop.f32.mrb[0].mxu0
        %402 = vmatprep.mubr.f32.mxu0 0.0
        %403 = vmatmul.mubr.f32.gmra.mrb[0].mxu0 %v283
        %v404 = vpop.f32.mrb[0].mxu0
        %v405 = vadd.f32 0.0, %v404
        %v406 = vpop.f32.mrb[0].mxu0
        %407 = vmatprep.mubr.f32.mxu0 0.0
        %408 = vmatmul.mubr.f32.gmra.mrb[0].mxu0 %v286
        %v409 = vpop.f32.mrb[0].mxu0
        %v410 = vadd.f32 0.0, %v409
        %v411 = vpop.f32.mrb[0].mxu0
        %412 = vmatprep.mubr.f32.mxu0 0.0
        %413 = vmatmul.mubr.f32.gmra.mrb[0].mxu0 %v289
        %v414 = vpop.f32.mrb[0].mxu0
        %v415 = vadd.f32 0.0, %v414
        %v416 = vpop.f32.mrb[0].mxu0
        %417 = vmatprep.mubr.f32.mxu0 0.0
        %418 = vmatmul.mubr.f32.gmra.mrb[0].mxu0 %v292
        %v419 = vpop.f32.mrb[0].mxu0
        %v420 = vadd.f32 0.0, %v419
        %v421 = vpop.f32.mrb[0].mxu0
        %422 = vmatprep.mubr.f32.mxu0 0.0
        %423 = vmatmul.mubr.f32.gmra.mrb[0].mxu0 %v295
        %v424 = vpop.f32.mrb[0].mxu0
        %v425 = vadd.f32 0.0, %v424
        %v426 = vpop.f32.mrb[0].mxu0
        %427 = vmatprep.mubr.f32.mxu0 0.0
        %428 = vmatmul.mubr.f32.gmra.mrb[0].mxu0 %v298
        %v429 = vpop.f32.mrb[0].mxu0
        %v430 = vadd.f32 0.0, %v429
        %v431 = vpop.f32.mrb[0].mxu0
        %432 = vmatprep.mubr.f32.mxu0 0.0
        %433 = vmatmul.mubr.f32.gmra.mrb[0].mxu0 %v301
        %v434 = vpop.f32.mrb[0].mxu0
        %v435 = vadd.f32 0.0, %v434
        %v436 = vpop.f32.mrb[0].mxu0
        %437 = vmatprep.mubr.f32.mxu0 0.0
        %438 = vmatmul.mubr.f32.gmra.mrb[0].mxu0 %v304
        %v439 = vpop.f32.mrb[0].mxu0
        %v440 = vadd.f32 0.0, %v439
        %v441 = vpop.f32.mrb[0].mxu0
        %442 = vmatprep.mubr.f32.mxu0 0.0
        %443 = vmatmul.mubr.f32.gmra.mrb[0].mxu0 %v307
        %v444 = vpop.f32.mrb[0].mxu0
        %v445 = vadd.f32 0.0, %v444
        %v446 = vpop.f32.mrb[0].mxu0
        %447 = vmatprep.mubr.f32.mxu0 0.0
        %448 = vmatmul.mubr.f32.gmra.mrb[0].mxu0 %v310
        %v449 = vpop.f32.mrb[0].mxu0
        %v450 = vadd.f32 0.0, %v449
        %v451 = vpop.f32.mrb[0].mxu0
        %452 = vmatprep.mubr.f32.mxu0 0.0
        %453 = vmatmul.mubr.f32.gmra.mrb[0].mxu0 %v313
        %v454 = vpop.f32.mrb[0].mxu0
        %v455 = vadd.f32 0.0, %v454
        %v456 = vpop.f32.mrb[0].mxu0
        %457 = vmatprep.mubr.f32.mxu0 0.0
        %458 = vmatmul.mubr.f32.gmra.mrb[0].mxu0 %v316
        %v459 = vpop.f32.mrb[0].mxu0
        %v460 = vadd.f32 0.0, %v459
        %v461 = vpop.f32.mrb[0].mxu0
        %462 = vdwg.mxu0
        %v463 = vld [vmem:[%s204] sm:$0xff]
        %v464 = vld [vmem:[%s204 + $0x8] sm:$0xff]
        %v465 = vld [vmem:[%s204 + $0x20] sm:$0xff]
        %v466 = vld [vmem:[%s204 + $0x28] sm:$0xff]
        %v467 = vld [vmem:[%s204 + $0x40] sm:$0xff]
        %v468 = vld [vmem:[%s204 + $0x48] sm:$0xff]
        %v469 = vld [vmem:[%s204 + $0x60] sm:$0xff]
        %v470 = vld [vmem:[%s204 + $0x68] sm:$0xff]
        %v471 = vld [vmem:[%s204 + $0x80] sm:$0xff]
        %v472 = vld [vmem:[%s204 + $0x88] sm:$0xff]
        %v473 = vld [vmem:[%s204 + $0xa0] sm:$0xff]
        %v474 = vld [vmem:[%s204 + $0xa8] sm:$0xff]
        %v475 = vld [vmem:[%s204 + $0xc0] sm:$0xff]
        %v476 = vld [vmem:[%s204 + $0xc8] sm:$0xff]
        %v477 = vld [vmem:[%s204 + $0xe0] sm:$0xff]
        %v478 = vld [vmem:[%s204 + $0xe8] sm:$0xff]
        %v479 = vsub.f32 %v385, %v463
        %v480 = vsub.f32 %v390, %v464
        %v481 = vsub.f32 %v395, %v465
        %v482 = vsub.f32 %v400, %v466
        %v483 = vsub.f32 %v405, %v467
        %v484 = vsub.f32 %v410, %v468
        %v485 = vsub.f32 %v415, %v469
        %v486 = vsub.f32 %v420, %v470
        %v487 = vsub.f32 %v425, %v471
        %v488 = vsub.f32 %v430, %v472
        %v489 = vsub.f32 %v435, %v473
        %v490 = vsub.f32 %v440, %v474
        %v491 = vsub.f32 %v445, %v475
        %v492 = vsub.f32 %v450, %v476
        %v493 = vsub.f32 %v455, %v477
        %v494 = vsub.f32 %v460, %v478
        %v495 = vstv %s248
        %v496 = vmul.f32 %v495, %v479
        %v497 = vmul.f32 %v495, %v480
        %v498 = vmul.f32 %v495, %v481
        %v499 = vmul.f32 %v495, %v482
        %v500 = vmul.f32 %v495, %v483
        %v501 = vmul.f32 %v495, %v484
        %v502 = vmul.f32 %v495, %v485
        %v503 = vmul.f32 %v495, %v486
        %v504 = vmul.f32 %v495, %v487
        %v505 = vmul.f32 %v495, %v488
        %v506 = vmul.f32 %v495, %v489
        %v507 = vmul.f32 %v495, %v490
        %v508 = vmul.f32 %v495, %v491
        %v509 = vmul.f32 %v495, %v492
        %v510 = vmul.f32 %v495, %v493
        %v511 = vmul.f32 %v495, %v494
        %v512 = vadd.f32 %v463, %v496
        %v513 = vadd.f32 %v464, %v497
        %v514 = vadd.f32 %v465, %v498
        %v515 = vadd.f32 %v466, %v499
        %v516 = vadd.f32 %v467, %v500
        %v517 = vadd.f32 %v468, %v501
        %v518 = vadd.f32 %v469, %v502
        %v519 = vadd.f32 %v470, %v503
        %v520 = vadd.f32 %v471, %v504
        %v521 = vadd.f32 %v472, %v505
        %v522 = vadd.f32 %v473, %v506
        %v523 = vadd.f32 %v474, %v507
        %v524 = vadd.f32 %v475, %v508
        %v525 = vadd.f32 %v476, %v509
        %v526 = vadd.f32 %v477, %v510
        %v527 = vadd.f32 %v478, %v511
        %528 = vst.msk [vmem:[%s235] sm:$0xff] %vm269, %v512
        %529 = vst.msk [vmem:[%s235 + $0x8] sm:$0xff] %vm269, %v513
        %530 = vst.msk [vmem:[%s235 + $0x20] sm:$0xff] %vm269, %v514
        %531 = vst.msk [vmem:[%s235 + $0x28] sm:$0xff] %vm269, %v515
        %532 = vst.msk [vmem:[%s235 + $0x40] sm:$0xff] %vm269, %v516
        %533 = vst.msk [vmem:[%s235 + $0x48] sm:$0xff] %vm269, %v517
        %534 = vst.msk [vmem:[%s235 + $0x60] sm:$0xff] %vm269, %v518
        %535 = vst.msk [vmem:[%s235 + $0x68] sm:$0xff] %vm269, %v519
        %536 = vst.msk [vmem:[%s235 + $0x80] sm:$0xff] %vm269, %v520
        %537 = vst.msk [vmem:[%s235 + $0x88] sm:$0xff] %vm269, %v521
        %538 = vst.msk [vmem:[%s235 + $0xa0] sm:$0xff] %vm269, %v522
        %539 = vst.msk [vmem:[%s235 + $0xa8] sm:$0xff] %vm269, %v523
        %540 = vst.msk [vmem:[%s235 + $0xc0] sm:$0xff] %vm269, %v524
        %541 = vst.msk [vmem:[%s235 + $0xc8] sm:$0xff] %vm269, %v525
        %542 = vst.msk [vmem:[%s235 + $0xe0] sm:$0xff] %vm269, %v526
        %543 = vst.msk [vmem:[%s235 + $0xe8] sm:$0xff] %vm269, %v527
        %s544 = scalar_lea.vmem %s2, 32
        %v545 = vld [vmem:[%s544] sm:$0xff]
        %v546 = vld [vmem:[%s544 + $0x8] sm:$0xff]
        %v547 = vld [vmem:[%s544 + $0x10] sm:$0xff]
        %v548 = vld [vmem:[%s544 + $0x18] sm:$0xff]
        %549 = vmatprep.subr.mxu0 0.0
        %550 = vmatpush1.msra.mxu0 %v545
        %551 = vmatprep.subr.mxu0 0.0
        %552 = vmatpush1.msra.mxu0 %v546
        %553 = vmatprep.subr.mxu0 0.0
        %554 = vmatpush1.msra.mxu0 %v547
        %555 = vmatprep.subr.mxu0 0.0
        %556 = vmatpush1.msra.mxu0 %v548
        %557 = vmatprep.subr.mxu0 0.0
        %558 = vmatpush1.msra.mxu0 0.0
        %559 = vmatprep.subr.mxu0 0.0
        %560 = vmatpush1.msra.mxu0 0.0
        %561 = vmatprep.subr.mxu0 0.0
        %562 = vmatpush1.msra.mxu0 0.0
        %563 = vmatprep.subr.mxu0 0.0
        %564 = vmatpush1.msra.mxu0 0.0
        %565 = vmatprep.subr.mxu0 0.0
        %566 = vmatpush1.msra.mxu0 0.0
        %567 = vmatprep.subr.mxu0 0.0
        %568 = vmatpush1.msra.mxu0 0.0
        %569 = vmatprep.subr.mxu0 0.0
        %570 = vmatpush1.msra.mxu0 0.0
        %571 = vmatprep.subr.mxu0 0.0
        %572 = vmatpush1.msra.mxu0 0.0
        %573 = vmatprep.subr.mxu0 0.0
        %574 = vmatpush1.msra.mxu0 0.0
        %575 = vmatprep.subr.mxu0 0.0
        %576 = vmatpush1.msra.mxu0 0.0
        %577 = vmatprep.subr.mxu0 0.0
        %578 = vmatpush1.msra.mxu0 0.0
        %579 = vmatprep.subr.mxu0 0.0
        %580 = vmatpush1.msra.mxu0 0.0
        %581 = vmatprep.subr.mxu0 0.0
        %582 = vmatpush1.msra.mxu0 0.0
        %583 = vmatprep.subr.mxu0 0.0
        %584 = vmatpush1.msra.mxu0 0.0
        %585 = vmatprep.subr.mxu0 0.0
        %586 = vmatpush1.msra.mxu0 0.0
        %587 = vmatprep.subr.mxu0 0.0
        %588 = vmatpush1.msra.mxu0 0.0
        %589 = vmatprep.subr.mxu0 0.0
        %590 = vmatpush1.msra.mxu0 0.0
        %591 = vmatprep.subr.mxu0 0.0
        %592 = vmatpush1.msra.mxu0 0.0
        %593 = vmatprep.subr.mxu0 0.0
        %594 = vmatpush1.msra.mxu0 0.0
        %595 = vmatprep.subr.mxu0 0.0
        %596 = vmatpush1.msra.mxu0 0.0
        %597 = vmatprep.subr.mxu0 0.0
        %598 = vmatpush1.msra.mxu0 0.0
        %599 = vmatprep.subr.mxu0 0.0
        %600 = vmatpush1.msra.mxu0 0.0
        %601 = vmatprep.subr.mxu0 0.0
        %602 = vmatpush1.msra.mxu0 0.0
        %603 = vmatprep.subr.mxu0 0.0
        %604 = vmatpush1.msra.mxu0 0.0
        %605 = vmatprep.subr.mxu0 0.0
        %606 = vmatpush1.msra.mxu0 0.0
        %607 = vmatprep.subr.mxu0 0.0
        %608 = vmatpush1.msra.mxu0 0.0
        %609 = vmatprep.subr.mxu0 0.0
        %610 = vmatpush1.msra.mxu0 0.0
        %611 = vmatprep.subr.mxu0 0.0
        %612 = vmatpush1.msra.mxu0 0.0
        %613 = vmatprep.mubr.f32.mxu0 0.0
        %614 = vmatmul.mubr.f32.gmra.mrb[0].mxu0 %v271
        %v615 = vpop.f32.mrb[0].mxu0
        %v616 = vadd.f32 0.0, %v615
        %v617 = vpop.f32.mrb[0].mxu0
        %618 = vmatprep.mubr.f32.mxu0 0.0
        %619 = vmatmul.mubr.f32.gmra.mrb[0].mxu0 %v274
        %v620 = vpop.f32.mrb[0].mxu0
        %v621 = vadd.f32 0.0, %v620
        %v622 = vpop.f32.mrb[0].mxu0
        %623 = vmatprep.mubr.f32.mxu0 0.0
        %624 = vmatmul.mubr.f32.gmra.mrb[0].mxu0 %v277
        %v625 = vpop.f32.mrb[0].mxu0
        %v626 = vadd.f32 0.0, %v625
        %v627 = vpop.f32.mrb[0].mxu0
        %628 = vmatprep.mubr.f32.mxu0 0.0
        %629 = vmatmul.mubr.f32.gmra.mrb[0].mxu0 %v280
        %v630 = vpop.f32.mrb[0].mxu0
        %v631 = vadd.f32 0.0, %v630
        %v632 = vpop.f32.mrb[0].mxu0
        %633 = vmatprep.mubr.f32.mxu0 0.0
        %634 = vmatmul.mubr.f32.gmra.mrb[0].mxu0 %v283
        %v635 = vpop.f32.mrb[0].mxu0
        %v636 = vadd.f32 0.0, %v635
        %v637 = vpop.f32.mrb[0].mxu0
        %638 = vmatprep.mubr.f32.mxu0 0.0
        %639 = vmatmul.mubr.f32.gmra.mrb[0].mxu0 %v286
        %v640 = vpop.f32.mrb[0].mxu0
        %v641 = vadd.f32 0.0, %v640
        %v642 = vpop.f32.mrb[0].mxu0
        %643 = vmatprep.mubr.f32.mxu0 0.0
        %644 = vmatmul.mubr.f32.gmra.mrb[0].mxu0 %v289
        %v645 = vpop.f32.mrb[0].mxu0
        %v646 = vadd.f32 0.0, %v645
        %v647 = vpop.f32.mrb[0].mxu0
        %648 = vmatprep.mubr.f32.mxu0 0.0
        %649 = vmatmul.mubr.f32.gmra.mrb[0].mxu0 %v292
        %v650 = vpop.f32.mrb[0].mxu0
        %v651 = vadd.f32 0.0, %v650
        %v652 = vpop.f32.mrb[0].mxu0
        %653 = vmatprep.mubr.f32.mxu0 0.0
        %654 = vmatmul.mubr.f32.gmra.mrb[0].mxu0 %v295
        %v655 = vpop.f32.mrb[0].mxu0
        %v656 = vadd.f32 0.0, %v655
        %v657 = vpop.f32.mrb[0].mxu0
        %658 = vmatprep.mubr.f32.mxu0 0.0
        %659 = vmatmul.mubr.f32.gmra.mrb[0].mxu0 %v298
        %v660 = vpop.f32.mrb[0].mxu0
        %v661 = vadd.f32 0.0, %v660
        %v662 = vpop.f32.mrb[0].mxu0
        %663 = vmatprep.mubr.f32.mxu0 0.0
        %664 = vmatmul.mubr.f32.gmra.mrb[0].mxu0 %v301
        %v665 = vpop.f32.mrb[0].mxu0
        %v666 = vadd.f32 0.0, %v665
        %v667 = vpop.f32.mrb[0].mxu0
        %668 = vmatprep.mubr.f32.mxu0 0.0
        %669 = vmatmul.mubr.f32.gmra.mrb[0].mxu0 %v304
        %v670 = vpop.f32.mrb[0].mxu0
        %v671 = vadd.f32 0.0, %v670
        %v672 = vpop.f32.mrb[0].mxu0
        %673 = vmatprep.mubr.f32.mxu0 0.0
        %674 = vmatmul.mubr.f32.gmra.mrb[0].mxu0 %v307
        %v675 = vpop.f32.mrb[0].mxu0
        %v676 = vadd.f32 0.0, %v675
        %v677 = vpop.f32.mrb[0].mxu0
        %678 = vmatprep.mubr.f32.mxu0 0.0
        %679 = vmatmul.mubr.f32.gmra.mrb[0].mxu0 %v310
        %v680 = vpop.f32.mrb[0].mxu0
        %v681 = vadd.f32 0.0, %v680
        %v682 = vpop.f32.mrb[0].mxu0
        %683 = vmatprep.mubr.f32.mxu0 0.0
        %684 = vmatmul.mubr.f32.gmra.mrb[0].mxu0 %v313
        %v685 = vpop.f32.mrb[0].mxu0
        %v686 = vadd.f32 0.0, %v685
        %v687 = vpop.f32.mrb[0].mxu0
        %688 = vmatprep.mubr.f32.mxu0 0.0
        %689 = vmatmul.mubr.f32.gmra.mrb[0].mxu0 %v316
        %v690 = vpop.f32.mrb[0].mxu0
        %v691 = vadd.f32 0.0, %v690
        %v692 = vpop.f32.mrb[0].mxu0
        %693 = vdwg.mxu0
        %s694 = scalar_lea.vmem %s204, 16 [#allocation4]
        %v695 = vld [vmem:[%s694] sm:$0xff]
        %v696 = vld [vmem:[%s694 + $0x8] sm:$0xff]
        %v697 = vld [vmem:[%s694 + $0x20] sm:$0xff]
        %v698 = vld [vmem:[%s694 + $0x28] sm:$0xff]
        %v699 = vld [vmem:[%s694 + $0x40] sm:$0xff]
        %v700 = vld [vmem:[%s694 + $0x48] sm:$0xff]
        %v701 = vld [vmem:[%s694 + $0x60] sm:$0xff]
        %v702 = vld [vmem:[%s694 + $0x68] sm:$0xff]
        %v703 = vld [vmem:[%s694 + $0x80] sm:$0xff]
        %v704 = vld [vmem:[%s694 + $0x88] sm:$0xff]
        %v705 = vld [vmem:[%s694 + $0xa0] sm:$0xff]
        %v706 = vld [vmem:[%s694 + $0xa8] sm:$0xff]
        %v707 = vld [vmem:[%s694 + $0xc0] sm:$0xff]
        %v708 = vld [vmem:[%s694 + $0xc8] sm:$0xff]
        %v709 = vld [vmem:[%s694 + $0xe0] sm:$0xff]
        %v710 = vld [vmem:[%s694 + $0xe8] sm:$0xff]
        %v711 = vsub.f32 %v616, %v695
        %v712 = vsub.f32 %v621, %v696
        %v713 = vsub.f32 %v626, %v697
        %v714 = vsub.f32 %v631, %v698
        %v715 = vsub.f32 %v636, %v699
        %v716 = vsub.f32 %v641, %v700
        %v717 = vsub.f32 %v646, %v701
        %v718 = vsub.f32 %v651, %v702
        %v719 = vsub.f32 %v656, %v703
        %v720 = vsub.f32 %v661, %v704
        %v721 = vsub.f32 %v666, %v705
        %v722 = vsub.f32 %v671, %v706
        %v723 = vsub.f32 %v676, %v707
        %v724 = vsub.f32 %v681, %v708
        %v725 = vsub.f32 %v686, %v709
        %v726 = vsub.f32 %v691, %v710
        %v727 = vmul.f32 %v495, %v711
        %v728 = vmul.f32 %v495, %v712
        %v729 = vmul.f32 %v495, %v713
        %v730 = vmul.f32 %v495, %v714
        %v731 = vmul.f32 %v495, %v715
        %v732 = vmul.f32 %v495, %v716
        %v733 = vmul.f32 %v495, %v717
        %v734 = vmul.f32 %v495, %v718
        %v735 = vmul.f32 %v495, %v719
        %v736 = vmul.f32 %v495, %v720
        %v737 = vmul.f32 %v495, %v721
        %v738 = vmul.f32 %v495, %v722
        %v739 = vmul.f32 %v495, %v723
        %v740 = vmul.f32 %v495, %v724
        %v741 = vmul.f32 %v495, %v725
        %v742 = vmul.f32 %v495, %v726
        %v743 = vadd.f32 %v695, %v727
        %v744 = vadd.f32 %v696, %v728
        %v745 = vadd.f32 %v697, %v729
        %v746 = vadd.f32 %v698, %v730
        %v747 = vadd.f32 %v699, %v731
        %v748 = vadd.f32 %v700, %v732
        %v749 = vadd.f32 %v701, %v733
        %v750 = vadd.f32 %v702, %v734
        %v751 = vadd.f32 %v703, %v735
        %v752 = vadd.f32 %v704, %v736
        %v753 = vadd.f32 %v705, %v737
        %v754 = vadd.f32 %v706, %v738
        %v755 = vadd.f32 %v707, %v739
        %v756 = vadd.f32 %v708, %v740
        %v757 = vadd.f32 %v709, %v741
        %v758 = vadd.f32 %v710, %v742
        %s759 = scalar_lea.vmem %s235, 16 [#allocation7]
        %760 = vst.msk [vmem:[%s759] sm:$0xff] %vm269, %v743
        %761 = vst.msk [vmem:[%s759 + $0x8] sm:$0xff] %vm269, %v744
        %762 = vst.msk [vmem:[%s759 + $0x20] sm:$0xff] %vm269, %v745
        %763 = vst.msk [vmem:[%s759 + $0x28] sm:$0xff] %vm269, %v746
        %764 = vst.msk [vmem:[%s759 + $0x40] sm:$0xff] %vm269, %v747
        %765 = vst.msk [vmem:[%s759 + $0x48] sm:$0xff] %vm269, %v748
        %766 = vst.msk [vmem:[%s759 + $0x60] sm:$0xff] %vm269, %v749
        %767 = vst.msk [vmem:[%s759 + $0x68] sm:$0xff] %vm269, %v750
        %768 = vst.msk [vmem:[%s759 + $0x80] sm:$0xff] %vm269, %v751
        %769 = vst.msk [vmem:[%s759 + $0x88] sm:$0xff] %vm269, %v752
        %770 = vst.msk [vmem:[%s759 + $0xa0] sm:$0xff] %vm269, %v753
        %771 = vst.msk [vmem:[%s759 + $0xa8] sm:$0xff] %vm269, %v754
        %772 = vst.msk [vmem:[%s759 + $0xc0] sm:$0xff] %vm269, %v755
        %773 = vst.msk [vmem:[%s759 + $0xc8] sm:$0xff] %vm269, %v756
        %774 = vst.msk [vmem:[%s759 + $0xe0] sm:$0xff] %vm269, %v757
        %775 = vst.msk [vmem:[%s759 + $0xe8] sm:$0xff] %vm269, %v758
        %s776 = sand.u32 %s121, 1
        %s777 = scalar_lea.sflag [#allocation6], %s776
        %s778 = sand.u32 %s121, 1
        %s779 = smul.addr %s778, 256
        %s780 = scalar_lea.vmem [#allocation7], %s779
        // Predicated region
        $region37: #{tpu_custom_call.1} parent=31 // pred_check
          %p781 = pneg %p131
        $region38: #{tpu_custom_call.1} parent=31 // pred_check_branch
          %783 = sbr.rel (%p781) target = $region40
        $region39: #{tpu_custom_call.1} parent=31 // pred_region
          %s784 = smul.u32 8, %s27
          %s786 = ssub.s32 4096, 4096
          %787 = vsyncadd %s777, %s786
          %s788 = smul.addr %s784, 4
          %s789 = smul.addr %s26, 32
          %s790 = sadd.s32 %s788, %s789
          %s791 = smul.addr %s790, 128
          %s792 = scalar_lea.hbm %s4, %s791
          %s793 = sshll.u32 %s780, 4
          %s794 = int_to_ptr.vmem [resolvable:$true] %s793
          %799 = dma.vmem_to_hbm [thread:$0]  %s794, 4096, %s792, %s777, 128, 128, 8
        $region40: #{tpu_custom_call.1} parent=31 // pred_fallthru
          _
      $region32: #{tpu_custom_call.1} parent=5 // pred_fallthru
        _
      %p800 = scmp.le.s32.totalorder 2, %s17
      // Predicated region
      $region41: #{tpu_custom_call.1} parent=5 // pred_check
        %p801 = pneg %p800
      $region42: #{tpu_custom_call.1} parent=5 // pred_check_branch
        %803 = sbr.rel (%p801) target = $region44
      $region43: #{tpu_custom_call.1} parent=5 // pred_region
        %s804 = ssub.s32 %s17, 2
        // Predicated region
        $region45: #{tpu_custom_call.1} parent=43 // pred_check
          %p805 = pneg %p137
        $region46: #{tpu_custom_call.1} parent=43 // pred_check_branch
          %807 = sbr.rel (%p805) target = $region48
        $region47: #{tpu_custom_call.1} parent=43 // pred_region
          %s808 = sand.u32 %s122, 1
          %s809 = scalar_lea.sflag [#allocation6], %s808
          %s810 = sand.u32 %s122, 1
          %s811 = smul.addr %s810, 256
          %s812 = scalar_lea.vmem [#allocation7], %s811
          %813 = dma.done %s809, 4096
        $region48: #{tpu_custom_call.1} parent=43 // pred_fallthru
          _
      $region44: #{tpu_custom_call.1} parent=5 // pred_fallthru
        _
    $region6: #{tpu_custom_call.1} parent=1 // loop_footer
      %s21 = sadd.s32 1, %s17
    $region7: #{tpu_custom_call.1} parent=1 // loop_footer_branch
      %16 = sbr.rel target = $region3
    $region8: #{tpu_custom_call.1} parent=1 // loop_exit
      _
    %814 = vsyncpa [#allocation5], 1
    %s815 = scalar_lea.sflag [#allocation5], 1
    %816 = vsyncpa %s815, 1
    %817 = vsyncpa [#allocation6], 1
    %s818 = scalar_lea.sflag [#allocation6], 1
    %819 = vsyncpa %s818, 1

</llo_original>
